<compile_context>
chip_gen: v7x
topology: tpu7x:2x2x1
jax: 0.10.0
libtpu: 0.0.40
codegen_flags: <defaults>
</compile_context>

<pallas_src>
import jax
import jax.numpy as jnp
from jax.experimental import pallas as pl
from jax.experimental.pallas import tpu as pltpu


def _pad_to(n, m):
    return ((n + m - 1) // m) * m


def critic_mlp_kernel(s_ref, a_ref, g_ref,
                      w1s_ref, w1a_ref, w1g_ref, b1_ref,
                      w2_ref, b2_ref,
                      w3_ref, b3_ref,
                      w4_ref, b4_ref,
                      o_ref):
    # Layer 1: fused "concat" -- three row-block matmuls into one f32 acc.
    h = jnp.dot(s_ref[...], w1s_ref[...], preferred_element_type=jnp.float32)
    h += jnp.dot(a_ref[...], w1a_ref[...], preferred_element_type=jnp.float32)
    h += jnp.dot(g_ref[...], w1g_ref[...], preferred_element_type=jnp.float32)
    h = jnp.maximum(h + b1_ref[...], 0.0)                       # f32 VPU

    # Layers 2-3: bf16 MXU inputs, f32 accumulate, f32 bias/ReLU.
    h = jnp.dot(h.astype(jnp.bfloat16), w2_ref[...],
                preferred_element_type=jnp.float32)
    h = jnp.maximum(h + b2_ref[...], 0.0)

    h = jnp.dot(h.astype(jnp.bfloat16), w3_ref[...],
                preferred_element_type=jnp.float32)
    h = jnp.maximum(h + b3_ref[...], 0.0)

    # Layer 4: matvec -> VPU multiply + lane reduction (frees an MXU push and
    # avoids DMA'ing a 127/128-zero weight tile).
    q = jnp.sum(h * w4_ref[...], axis=-1, keepdims=True)        # (TB, 1) f32
    o_ref[...] = q + b4_ref[...]                                 # lane-dense (TB, 128)


def prepare_critic_params(params, state_size, action_size, goal_size, hidden_size):
    """One-time padding / splitting / casting of the Critic parameters."""
    (w1, b1), (w2, b2), (w3, b3), (w4, b4) = params
    Hp = _pad_to(hidden_size, 128)

    def pad_w(w, rows, cols, dtype):
        out = jnp.zeros((rows, cols), dtype)
        return out.at[:w.shape[0], :w.shape[1]].set(w.astype(dtype))

    def pad_row(v, cols, dtype):
        out = jnp.zeros((1, cols), dtype)
        return out.at[0, :v.shape[0]].set(v.astype(dtype))

    # W1 row blocks follow the torch.cat([s, a, g], dim=1) ordering.
    w1_s = w1[:state_size]
    w1_a = w1[state_size:state_size + action_size]
    w1_g = w1[state_size + action_size:]

    return {
        "w1s": pad_w(w1_s, state_size, Hp, jnp.bfloat16),
        "w1a": pad_w(w1_a, action_size, Hp, jnp.bfloat16),
        "w1g": pad_w(w1_g, goal_size, Hp, jnp.bfloat16),
        "b1":  pad_row(b1, Hp, jnp.float32),
        "w2":  pad_w(w2, Hp, Hp, jnp.bfloat16),
        "b2":  pad_row(b2, Hp, jnp.float32),
        "w3":  pad_w(w3, Hp, Hp, jnp.bfloat16),
        "b3":  pad_row(b3, Hp, jnp.float32),
        "w4":  pad_row(w4[:, 0], Hp, jnp.float32),               # (1, Hp) row
        "b4":  jnp.full((1, 128), b4[0], jnp.float32),
    }


def critic_forward(s, a, g, prepared, *, tb=256):
    """Per-call path: only casts + pads the activations, then one Pallas call."""
    B = s.shape[0]
    S, A, G = s.shape[1], a.shape[1], g.shape[1]
    Hp = prepared["w2"].shape[0]

    TB = min(tb, _pad_to(B, 16))       # bf16 sublane packing => multiple of 16
    Bp = _pad_to(B, TB)

    def prep_act(x):
        x = x.astype(jnp.bfloat16)
        if Bp != B:
            x = jnp.pad(x, ((0, Bp - B), (0, 0)))
        return x

    s_p, a_p, g_p = prep_act(s), prep_act(a), prep_act(g)

    act_spec = lambda d: pl.BlockSpec((TB, d), lambda i: (i, 0))
    res_spec = lambda shp: pl.BlockSpec(shp, lambda i: (0, 0))   # resident (no re-DMA)

    out_p = pl.pallas_call(
        critic_mlp_kernel,
        out_shape=jax.ShapeDtypeStruct((Bp, 128), jnp.float32),
        grid=(Bp // TB,),
        in_specs=[
            act_spec(S), act_spec(A), act_spec(G),
            res_spec((S, Hp)), res_spec((A, Hp)), res_spec((G, Hp)), res_spec((1, Hp)),
            res_spec((Hp, Hp)), res_spec((1, Hp)),
            res_spec((Hp, Hp)), res_spec((1, Hp)),
            res_spec((1, Hp)), res_spec((1, 128)),
        ],
        out_specs=pl.BlockSpec((TB, 128), lambda i: (i, 0)),
        compiler_params=pltpu.CompilerParams(
            dimension_semantics=("parallel",)),   # v7x: shard batch across both TCs
    )(s_p, a_p, g_p,
      prepared["w1s"], prepared["w1a"], prepared["w1g"], prepared["b1"],
      prepared["w2"], prepared["b2"],
      prepared["w3"], prepared["b3"],
      prepared["w4"], prepared["b4"])

    # .view(-1): real batch rows, real output column.
    return out_p[:B, 0]


def init_critic_params(key, state_size, goal_size, action_size, hidden_size):
    """Deterministic init matching the module's layer shapes (num_layers=4)."""
    in_size = state_size + goal_size + action_size
    sizes = [(in_size, hidden_size),
             (hidden_size, hidden_size),
             (hidden_size, hidden_size),
             (hidden_size, 1)]
    params = []
    for fan_in, fan_out in sizes:
        key, kw, kb = jax.random.split(key, 3)
        bound = 1.0 / jnp.sqrt(fan_in)          # PyTorch default Linear init
        w = jax.random.uniform(kw, (fan_in, fan_out), jnp.float32, -bound, bound)
        b = jax.random.uniform(kb, (fan_out,), jnp.float32, -bound, bound)
        params.append((w, b))
    return params


if __name__ == "__main__":
    key = jax.random.PRNGKey(0)

    # Small, module-consistent shapes.
    batch = 8
    state_size, goal_size, action_size = 16, 8, 4
    hidden_size = 32

    k_s, k_a, k_g, k_p = jax.random.split(key, 4)
    s = jax.random.normal(k_s, (batch, state_size), jnp.float32)
    a = jax.random.normal(k_a, (batch, action_size), jnp.float32)
    g = jax.random.normal(k_g, (batch, goal_size), jnp.float32)

    params = init_critic_params(k_p, state_size, goal_size, action_size, hidden_size)
    # One-time parameter preparation (padding / split / bf16 cast) -- hoisted
    # out of the per-call path.
    prepared = prepare_critic_params(params, state_size, action_size,
                                     goal_size, hidden_size)

    fwd = jax.jit(critic_forward)
    q = fwd(s, a, g, prepared)
    jax.block_until_ready(q)

    # Reference check in plain f32 JAX (bf16 MXU inputs => loosened tolerance).
    x = jnp.concatenate([s, a, g], axis=1)
    h = x
    for i, (w, b) in enumerate(params):
        h = h @ w + b
        if i < len(params) - 1:
            h = jnp.maximum(h, 0.0)
    ref = h.reshape(-1)

    assert q.shape == (batch,)
    assert jnp.allclose(q, ref, atol=3e-2, rtol=3e-2), (q, ref)

    print("KERNEL_OK")
</pallas_src>

<mosaic_0001>
module attributes {stable_mosaic.version = 11 : i64} {
  func.func @critic_mlp_kernel(%arg0: i32, %arg1: memref<16x16xbf16, #tpu.memory_space<vmem>>, %arg2: memref<16x4xbf16, #tpu.memory_space<vmem>>, %arg3: memref<16x8xbf16, #tpu.memory_space<vmem>>, %arg4: memref<16x128xbf16, #tpu.memory_space<vmem>>, %arg5: memref<4x128xbf16, #tpu.memory_space<vmem>>, %arg6: memref<8x128xbf16, #tpu.memory_space<vmem>>, %arg7: memref<1x128xf32, #tpu.memory_space<vmem>>, %arg8: memref<128x128xbf16, #tpu.memory_space<vmem>>, %arg9: memref<1x128xf32, #tpu.memory_space<vmem>>, %arg10: memref<128x128xbf16, #tpu.memory_space<vmem>>, %arg11: memref<1x128xf32, #tpu.memory_space<vmem>>, %arg12: memref<1x128xf32, #tpu.memory_space<vmem>>, %arg13: memref<1x128xf32, #tpu.memory_space<vmem>>, %arg14: memref<16x128xf32, #tpu.memory_space<vmem>>) attributes {dimension_semantics = [#tpu.dimension_semantics<parallel>], iteration_bounds = array<i64: 1>, scalar_prefetch = 0 : i64, scratch_operands = 0 : i64, tpu.core_type = #tpu.core_type<tc>, window_params = [{transform_indices = @transform_0, window_bounds = array<i64: 16, 16>}, {transform_indices = @transform_1, window_bounds = array<i64: 16, 4>}, {transform_indices = @transform_2, window_bounds = array<i64: 16, 8>}, {pipeline_mode = #tpu.pipeline_mode<synchronous>, transform_indices = @transform_3, window_bounds = array<i64: 16, 128>}, {pipeline_mode = #tpu.pipeline_mode<synchronous>, transform_indices = @transform_4, window_bounds = array<i64: 4, 128>}, {pipeline_mode = #tpu.pipeline_mode<synchronous>, transform_indices = @transform_5, window_bounds = array<i64: 8, 128>}, {pipeline_mode = #tpu.pipeline_mode<synchronous>, transform_indices = @transform_6, window_bounds = array<i64: 1, 128>}, {pipeline_mode = #tpu.pipeline_mode<synchronous>, transform_indices = @transform_7, window_bounds = array<i64: 128, 128>}, {pipeline_mode = #tpu.pipeline_mode<synchronous>, transform_indices = @transform_8, window_bounds = array<i64: 1, 128>}, {pipeline_mode = #tpu.pipeline_mode<synchronous>, transform_indices = @transform_9, window_bounds = array<i64: 128, 128>}, {pipeline_mode = #tpu.pipeline_mode<synchronous>, transform_indices = @transform_10, window_bounds = array<i64: 1, 128>}, {pipeline_mode = #tpu.pipeline_mode<synchronous>, transform_indices = @transform_11, window_bounds = array<i64: 1, 128>}, {pipeline_mode = #tpu.pipeline_mode<synchronous>, transform_indices = @transform_12, window_bounds = array<i64: 1, 128>}, {transform_indices = @transform_13, window_bounds = array<i64: 16, 128>}]} {
    %c0 = arith.constant 0 : index
    %c0_0 = arith.constant 0 : index
    %0 = vector.load %arg1[%c0, %c0_0] : memref<16x16xbf16, #tpu.memory_space<vmem>>, vector<16x16xbf16>
    %c0_1 = arith.constant 0 : index
    %c0_2 = arith.constant 0 : index
    %1 = vector.load %arg4[%c0_1, %c0_2] : memref<16x128xbf16, #tpu.memory_space<vmem>>, vector<16x128xbf16>
    %cst = arith.constant dense<0.000000e+00> : vector<16x128xf32>
    %2 = tpu.matmul %0, %1, %cst {dimension_numbers = #tpu.dot_dimension_numbers<[1], [0], [0], [1], [0, 0, 1, 1], [], []>} : vector<16x16xbf16>, vector<16x128xbf16>, vector<16x128xf32> -> vector<16x128xf32>
    %c0_3 = arith.constant 0 : index
    %c0_4 = arith.constant 0 : index
    %3 = vector.load %arg2[%c0_3, %c0_4] : memref<16x4xbf16, #tpu.memory_space<vmem>>, vector<16x4xbf16>
    %c0_5 = arith.constant 0 : index
    %c0_6 = arith.constant 0 : index
    %4 = vector.load %arg5[%c0_5, %c0_6] : memref<4x128xbf16, #tpu.memory_space<vmem>>, vector<4x128xbf16>
    %cst_7 = arith.constant dense<0.000000e+00> : vector<16x128xf32>
    %5 = tpu.matmul %3, %4, %cst_7 {dimension_numbers = #tpu.dot_dimension_numbers<[1], [0], [0], [1], [0, 0, 1, 1], [], []>} : vector<16x4xbf16>, vector<4x128xbf16>, vector<16x128xf32> -> vector<16x128xf32>
    %6 = arith.addf %2, %5 : vector<16x128xf32>
    %c0_8 = arith.constant 0 : index
    %c0_9 = arith.constant 0 : index
    %7 = vector.load %arg3[%c0_8, %c0_9] : memref<16x8xbf16, #tpu.memory_space<vmem>>, vector<16x8xbf16>
    %c0_10 = arith.constant 0 : index
    %c0_11 = arith.constant 0 : index
    %8 = vector.load %arg6[%c0_10, %c0_11] : memref<8x128xbf16, #tpu.memory_space<vmem>>, vector<8x128xbf16>
    %cst_12 = arith.constant dense<0.000000e+00> : vector<16x128xf32>
    %9 = tpu.matmul %7, %8, %cst_12 {dimension_numbers = #tpu.dot_dimension_numbers<[1], [0], [0], [1], [0, 0, 1, 1], [], []>} : vector<16x8xbf16>, vector<8x128xbf16>, vector<16x128xf32> -> vector<16x128xf32>
    %10 = arith.addf %6, %9 : vector<16x128xf32>
    %c0_13 = arith.constant 0 : index
    %c0_14 = arith.constant 0 : index
    %11 = vector.load %arg7[%c0_13, %c0_14] : memref<1x128xf32, #tpu.memory_space<vmem>>, vector<1x128xf32>
    %12 = vector.broadcast %11 : vector<1x128xf32> to vector<16x128xf32>
    %13 = arith.addf %10, %12 : vector<16x128xf32>
    %cst_15 = arith.constant 0.000000e+00 : f32
    %14 = vector.broadcast %cst_15 : f32 to vector<16x128xf32>
    %15 = arith.maximumf %13, %14 : vector<16x128xf32>
    %16 = arith.truncf %15 : vector<16x128xf32> to vector<16x128xbf16>
    %c0_16 = arith.constant 0 : index
    %c0_17 = arith.constant 0 : index
    %17 = vector.load %arg8[%c0_16, %c0_17] : memref<128x128xbf16, #tpu.memory_space<vmem>>, vector<128x128xbf16>
    %cst_18 = arith.constant dense<0.000000e+00> : vector<16x128xf32>
    %18 = tpu.matmul %16, %17, %cst_18 {dimension_numbers = #tpu.dot_dimension_numbers<[1], [0], [0], [1], [0, 0, 1, 1], [], []>} : vector<16x128xbf16>, vector<128x128xbf16>, vector<16x128xf32> -> vector<16x128xf32>
    %c0_19 = arith.constant 0 : index
    %c0_20 = arith.constant 0 : index
    %19 = vector.load %arg9[%c0_19, %c0_20] : memref<1x128xf32, #tpu.memory_space<vmem>>, vector<1x128xf32>
    %20 = vector.broadcast %19 : vector<1x128xf32> to vector<16x128xf32>
    %21 = arith.addf %18, %20 : vector<16x128xf32>
    %cst_21 = arith.constant 0.000000e+00 : f32
    %22 = vector.broadcast %cst_21 : f32 to vector<16x128xf32>
    %23 = arith.maximumf %21, %22 : vector<16x128xf32>
    %24 = arith.truncf %23 : vector<16x128xf32> to vector<16x128xbf16>
    %c0_22 = arith.constant 0 : index
    %c0_23 = arith.constant 0 : index
    %25 = vector.load %arg10[%c0_22, %c0_23] : memref<128x128xbf16, #tpu.memory_space<vmem>>, vector<128x128xbf16>
    %cst_24 = arith.constant dense<0.000000e+00> : vector<16x128xf32>
    %26 = tpu.matmul %24, %25, %cst_24 {dimension_numbers = #tpu.dot_dimension_numbers<[1], [0], [0], [1], [0, 0, 1, 1], [], []>} : vector<16x128xbf16>, vector<128x128xbf16>, vector<16x128xf32> -> vector<16x128xf32>
    %c0_25 = arith.constant 0 : index
    %c0_26 = arith.constant 0 : index
    %27 = vector.load %arg11[%c0_25, %c0_26] : memref<1x128xf32, #tpu.memory_space<vmem>>, vector<1x128xf32>
    %28 = vector.broadcast %27 : vector<1x128xf32> to vector<16x128xf32>
    %29 = arith.addf %26, %28 : vector<16x128xf32>
    %cst_27 = arith.constant 0.000000e+00 : f32
    %30 = vector.broadcast %cst_27 : f32 to vector<16x128xf32>
    %31 = arith.maximumf %29, %30 : vector<16x128xf32>
    %c0_28 = arith.constant 0 : index
    %c0_29 = arith.constant 0 : index
    %32 = vector.load %arg12[%c0_28, %c0_29] : memref<1x128xf32, #tpu.memory_space<vmem>>, vector<1x128xf32>
    %33 = vector.broadcast %32 : vector<1x128xf32> to vector<16x128xf32>
    %34 = arith.mulf %31, %33 : vector<16x128xf32>
    %cst_30 = arith.constant dense<0.000000e+00> : vector<16xf32>
    %35 = vector.multi_reduction <add>, %34, %cst_30 [1] : vector<16x128xf32> to vector<16xf32>
    %36 = vector.shape_cast %35 : vector<16xf32> to vector<16x1xf32>
    %c0_31 = arith.constant 0 : index
    %c0_32 = arith.constant 0 : index
    %37 = vector.load %arg13[%c0_31, %c0_32] : memref<1x128xf32, #tpu.memory_space<vmem>>, vector<1x128xf32>
    %38 = vector.broadcast %36 : vector<16x1xf32> to vector<16x128xf32>
    %39 = vector.broadcast %37 : vector<1x128xf32> to vector<16x128xf32>
    %40 = arith.addf %38, %39 : vector<16x128xf32>
    %c0_33 = arith.constant 0 : index
    %c0_34 = arith.constant 0 : index
    %41 = vector.load %arg14[%c0_33, %c0_34] : memref<16x128xf32, #tpu.memory_space<vmem>>, vector<16x128xf32>
    tpu.vector_store %arg14[%c0_33, %c0_34], %40 {strides = array<i32>} : memref<16x128xf32, #tpu.memory_space<vmem>>, vector<16x128xf32>,
    return
  }
  func.func @transform_0(%arg0: i32) -> (i32, i32) {
    %c0_i32 = arith.constant 0 : i32
    %c0_i32_0 = arith.constant 0 : i32
    return %arg0, %c0_i32 : i32, i32
  }
  func.func @transform_1(%arg0: i32) -> (i32, i32) {
    %c0_i32 = arith.constant 0 : i32
    %c0_i32_0 = arith.constant 0 : i32
    return %arg0, %c0_i32 : i32, i32
  }
  func.func @transform_2(%arg0: i32) -> (i32, i32) {
    %c0_i32 = arith.constant 0 : i32
    %c0_i32_0 = arith.constant 0 : i32
    return %arg0, %c0_i32 : i32, i32
  }
  func.func @transform_3(%arg0: i32) -> (i32, i32) {
    %c0_i32 = arith.constant 0 : i32
    %c0_i32_0 = arith.constant 0 : i32
    %c0_i32_1 = arith.constant 0 : i32
    return %c0_i32, %c0_i32_0 : i32, i32
  }
  func.func @transform_4(%arg0: i32) -> (i32, i32) {
    %c0_i32 = arith.constant 0 : i32
    %c0_i32_0 = arith.constant 0 : i32
    %c0_i32_1 = arith.constant 0 : i32
    return %c0_i32, %c0_i32_0 : i32, i32
  }
  func.func @transform_5(%arg0: i32) -> (i32, i32) {
    %c0_i32 = arith.constant 0 : i32
    %c0_i32_0 = arith.constant 0 : i32
    %c0_i32_1 = arith.constant 0 : i32
    return %c0_i32, %c0_i32_0 : i32, i32
  }
  func.func @transform_6(%arg0: i32) -> (i32, i32) {
    %c0_i32 = arith.constant 0 : i32
    %c0_i32_0 = arith.constant 0 : i32
    %c0_i32_1 = arith.constant 0 : i32
    return %c0_i32, %c0_i32_0 : i32, i32
  }
  func.func @transform_7(%arg0: i32) -> (i32, i32) {
    %c0_i32 = arith.constant 0 : i32
    %c0_i32_0 = arith.constant 0 : i32
    %c0_i32_1 = arith.constant 0 : i32
    return %c0_i32, %c0_i32_0 : i32, i32
  }
  func.func @transform_8(%arg0: i32) -> (i32, i32) {
    %c0_i32 = arith.constant 0 : i32
    %c0_i32_0 = arith.constant 0 : i32
    %c0_i32_1 = arith.constant 0 : i32
    return %c0_i32, %c0_i32_0 : i32, i32
  }
  func.func @transform_9(%arg0: i32) -> (i32, i32) {
    %c0_i32 = arith.constant 0 : i32
    %c0_i32_0 = arith.constant 0 : i32
    %c0_i32_1 = arith.constant 0 : i32
    return %c0_i32, %c0_i32_0 : i32, i32
  }
  func.func @transform_10(%arg0: i32) -> (i32, i32) {
    %c0_i32 = arith.constant 0 : i32
    %c0_i32_0 = arith.constant 0 : i32
    %c0_i32_1 = arith.constant 0 : i32
    return %c0_i32, %c0_i32_0 : i32, i32
  }
  func.func @transform_11(%arg0: i32) -> (i32, i32) {
    %c0_i32 = arith.constant 0 : i32
    %c0_i32_0 = arith.constant 0 : i32
    %c0_i32_1 = arith.constant 0 : i32
    return %c0_i32, %c0_i32_0 : i32, i32
  }
  func.func @transform_12(%arg0: i32) -> (i32, i32) {
    %c0_i32 = arith.constant 0 : i32
    %c0_i32_0 = arith.constant 0 : i32
    %c0_i32_1 = arith.constant 0 : i32
    return %c0_i32, %c0_i32_0 : i32, i32
  }
  func.func @transform_13(%arg0: i32) -> (i32, i32) {
    %c0_i32 = arith.constant 0 : i32
    %c0_i32_0 = arith.constant 0 : i32
    return %arg0, %c0_i32 : i32, i32
  }
}

</mosaic_0001>

<llo_original>
// kernel: critic_forward.1
$region0: #{critic_forward.1}
  #allocation0 [shape = 'u32[]', space=smem, size = 0x4, offset = 0x4, fixed_abs, tag = 'smem constant byte address 0x4 - core index']
  #allocation1 [shape = 'u32[144,128]{1,0:T(1,128)}', space=vmem, size = 0x12000, scoped, tag = 'internal scratch']
  %s0 = inlined_call_operand.vmem [shape: bf16[16,16], index: 0, kind: input, shape index: {}]
  %s1 = inlined_call_operand.vmem [shape: bf16[16,4], index: 1, kind: input, shape index: {}]
  %s2 = inlined_call_operand.vmem [shape: bf16[16,8], index: 2, kind: input, shape index: {}]
  %s3 = inlined_call_operand.vmem [shape: bf16[16,128], index: 3, kind: input, shape index: {}]
  %s4 = inlined_call_operand.vmem [shape: bf16[4,128], index: 4, kind: input, shape index: {}]
  %s5 = inlined_call_operand.vmem [shape: bf16[8,128], index: 5, kind: input, shape index: {}]
  %s6 = inlined_call_operand.vmem [shape: f32[1,128], index: 6, kind: input, shape index: {}]
  %s7 = inlined_call_operand.vmem [shape: bf16[128,128], index: 7, kind: input, shape index: {}]
  %s8 = inlined_call_operand.vmem [shape: f32[1,128], index: 8, kind: input, shape index: {}]
  %s9 = inlined_call_operand.hbm [shape: bf16[128,128], index: 9, kind: input, shape index: {}]
  %s10 = inlined_call_operand.vmem [shape: f32[1,128], index: 10, kind: input, shape index: {}]
  %s11 = inlined_call_operand.vmem [shape: f32[1,128], index: 11, kind: input, shape index: {}]
  %s12 = inlined_call_operand.vmem [shape: f32[1,128], index: 12, kind: input, shape index: {}]
  %s13 = inlined_call_operand.vmem [shape: f32[16,128], index: 13, kind: output, shape index: {}]
  %s14 = sld [smem:[#allocation0]]
  $region66: #{critic_forward.1} parent=0
    _
  %s16 = ssub.s32 1, %s14
  %s17 = scalar_select 0, %s16, %s14
  $region1: #{critic_forward.1} parent=0
    #allocation2 [shape = 'u8[32768]{0}', space=vmem, size = 0x8000, scoped, tag = 'input window, operand 9, single buffered']
    #allocation3 [shape = 's32[1]{0}', space=sflag, size = 0x4, scoped, tag = 'scoped memory for critic_forward.1']
    %18 = vsyncpa [#allocation3], 0
    // Predicated region
    $region2: #{critic_forward.1} parent=1 // pred_check
      _
    $region3: #{critic_forward.1} parent=1 // pred_check_branch
      %20 = sbr.rel (0) target = $region5
    $region4: #{critic_forward.1} parent=1 // pred_region
      _
    $region5: #{critic_forward.1} parent=1 // pred_fallthru
      _
    // Predicated region
    $region6: #{critic_forward.1} parent=1 // pred_check
      _
    $region7: #{critic_forward.1} parent=1 // pred_check_branch
      %22 = sbr.rel (0) target = $region9
    $region8: #{critic_forward.1} parent=1 // pred_region
      _
    $region9: #{critic_forward.1} parent=1 // pred_fallthru
      _
    // Predicated region
    $region10: #{critic_forward.1} parent=1 // pred_check
      _
    $region11: #{critic_forward.1} parent=1 // pred_check_branch
      %24 = sbr.rel (0) target = $region13
    $region12: #{critic_forward.1} parent=1 // pred_region
      _
    $region13: #{critic_forward.1} parent=1 // pred_fallthru
      _
    // Predicated region
    $region14: #{critic_forward.1} parent=1 // pred_check
      _
    $region15: #{critic_forward.1} parent=1 // pred_check_branch
      %26 = sbr.rel (0) target = $region17
    $region16: #{critic_forward.1} parent=1 // pred_region
      _
    $region17: #{critic_forward.1} parent=1 // pred_fallthru
      _
    // Predicated region
    $region18: #{critic_forward.1} parent=1 // pred_check
      _
    $region19: #{critic_forward.1} parent=1 // pred_check_branch
      %28 = sbr.rel (0) target = $region21
    $region20: #{critic_forward.1} parent=1 // pred_region
      _
    $region21: #{critic_forward.1} parent=1 // pred_fallthru
      _
    // Predicated region
    $region22: #{critic_forward.1} parent=1 // pred_check
      _
    $region23: #{critic_forward.1} parent=1 // pred_check_branch
      %30 = sbr.rel (0) target = $region25
    $region24: #{critic_forward.1} parent=1 // pred_region
      _
    $region25: #{critic_forward.1} parent=1 // pred_fallthru
      _
    // Predicated region
    $region26: #{critic_forward.1} parent=1 // pred_check
      _
    $region27: #{critic_forward.1} parent=1 // pred_check_branch
      %32 = sbr.rel (0) target = $region29
    $region28: #{critic_forward.1} parent=1 // pred_region
      _
    $region29: #{critic_forward.1} parent=1 // pred_fallthru
      _
    // Predicated region
    $region30: #{critic_forward.1} parent=1 // pred_check
      _
    $region31: #{critic_forward.1} parent=1 // pred_check_branch
      %34 = sbr.rel (0) target = $region33
    $region32: #{critic_forward.1} parent=1 // pred_region
      _
    $region33: #{critic_forward.1} parent=1 // pred_fallthru
      _
    // Predicated region
    $region34: #{critic_forward.1} parent=1 // pred_check
      _
    $region35: #{critic_forward.1} parent=1 // pred_check_branch
      %36 = sbr.rel (0) target = $region37
    $region36: #{critic_forward.1} parent=1 // pred_region
      _
    $region37: #{critic_forward.1} parent=1 // pred_fallthru
      _
    // Predicated region
    $region38: #{critic_forward.1} parent=1 // pred_check
      _
    $region39: #{critic_forward.1} parent=1 // pred_check_branch
      %38 = sbr.rel (0) target = $region41
    $region40: #{critic_forward.1} parent=1 // pred_region
      %s40 = ssub.s32 1024, 1024
      %41 = vsyncadd [#allocation3], %s40
      %s42 = sshll.u32 [#allocation2], 4
      %s43 = int_to_ptr.vmem [resolvable:$true] %s42
      %48 = dma.hbm_to_vmem [thread:$0]  %s9, 1024, %s43, [#allocation3], 64, 64, 4
    $region41: #{critic_forward.1} parent=1 // pred_fallthru
      _
    // Predicated region
    $region42: #{critic_forward.1} parent=1 // pred_check
      _
    $region43: #{critic_forward.1} parent=1 // pred_check_branch
      %50 = sbr.rel (0) target = $region45
    $region44: #{critic_forward.1} parent=1 // pred_region
      _
    $region45: #{critic_forward.1} parent=1 // pred_fallthru
      _
    // Predicated region
    $region46: #{critic_forward.1} parent=1 // pred_check
      _
    $region47: #{critic_forward.1} parent=1 // pred_check_branch
      %52 = sbr.rel (0) target = $region49
    $region48: #{critic_forward.1} parent=1 // pred_region
      _
    $region49: #{critic_forward.1} parent=1 // pred_fallthru
      _
    // Predicated region
    $region50: #{critic_forward.1} parent=1 // pred_check
      _
    $region51: #{critic_forward.1} parent=1 // pred_check_branch
      %54 = sbr.rel (0) target = $region53
    $region52: #{critic_forward.1} parent=1 // pred_region
      _
    $region53: #{critic_forward.1} parent=1 // pred_fallthru
      _
    // Predicated region
    $region54: #{critic_forward.1} parent=1 // pred_check
      _
    $region55: #{critic_forward.1} parent=1 // pred_check_branch
      %56 = sbr.rel (0) target = $region57
    $region56: #{critic_forward.1} parent=1 // pred_region
      %57 = dma.done [#allocation3], 1024
    $region57: #{critic_forward.1} parent=1 // pred_fallthru
      _
    %v59 = vld [vmem:[%s0] sm:$0xf]
    %v60 = vld [vmem:[%s0 + $0x4] sm:$0xf]
    %v61 = vld [vmem:[%s3] sm:$0xf]
    %v62 = vld [vmem:[%s3 + $0x4] sm:$0xf]
    %v63 = vld [vmem:[%s1] sm:$0xf]
    %v64 = vld [vmem:[%s1 + $0x4] sm:$0xf]
    %v65 = vld [vmem:[%s4] sm:$0x3]
    %v68 = vunpack.c.l.b16 %v63
    %v69 = vunpack.c.l.b16 %v64
    %v70 = vpack.c.b16 %v69, %v68
    %vm71 = vcmask 31744
    %v73 = vsel %vm71, %v70, 0
    %vm75 = vcmask 1041408
    %v77 = vsel %vm75, %v65, 0
    %79 = vmatprep.subr.bf16.mxu0 0
    %80 = vmatpush1.bf16.msra.mxu0 %v77
    %81 = vmatprep.subr.bf16.mxu0 0
    %82 = vmatpush1.bf16.msra.mxu0 0
    %83 = vmatprep.subr.bf16.mxu0 0
    %84 = vmatpush1.bf16.msra.mxu0 0
    %85 = vmatprep.subr.bf16.mxu0 0
    %86 = vmatpush1.bf16.msra.mxu0 0
    %87 = vmatprep.subr.bf16.mxu0 0
    %88 = vmatpush1.bf16.msra.mxu0 0
    %89 = vmatprep.subr.bf16.mxu0 0
    %90 = vmatpush1.bf16.msra.mxu0 0
    %91 = vmatprep.subr.bf16.mxu0 0
    %92 = vmatpush1.bf16.msra.mxu0 0
    %93 = vmatprep.subr.bf16.mxu0 0
    %94 = vmatpush1.bf16.msra.mxu0 0
    %95 = vmatprep.subr.bf16.mxu0 0
    %96 = vmatpush1.bf16.msra.mxu0 0
    %97 = vmatprep.subr.bf16.mxu0 0
    %98 = vmatpush1.bf16.msra.mxu0 0
    %99 = vmatprep.subr.bf16.mxu0 0
    %100 = vmatpush1.bf16.msra.mxu0 0
    %101 = vmatprep.subr.bf16.mxu0 0
    %102 = vmatpush1.bf16.msra.mxu0 0
    %103 = vmatprep.subr.bf16.mxu0 0
    %104 = vmatpush1.bf16.msra.mxu0 0
    %105 = vmatprep.subr.bf16.mxu0 0
    %106 = vmatpush1.bf16.msra.mxu0 0
    %107 = vmatprep.subr.bf16.mxu0 0
    %108 = vmatpush1.bf16.msra.mxu0 0
    %109 = vmatprep.subr.bf16.mxu0 0
    %110 = vmatpush1.bf16.msra.mxu0 0
    %111 = vmatprep.mubr.bf16.mxu0 0
    %112 = vmatmul.mubr.bf16.gmra.mrb[0].mxu0 %v73
    %v113 = vpop.f32.mrb[0].mxu0
    %v114 = vadd.f32 0.0, %v113
    %v115 = vpop.f32.mrb[0].mxu0
    %v116 = vpop.f32.mrb[0].mxu0
    %v117 = vadd.f32 0.0, %v116
    %v118 = vpop.f32.mrb[0].mxu0
    %119 = vdwg.mxu0
    %v122 = vunpack.c.l.b16 %v59
    %v123 = vunpack.c.l.b16 %v60
    %v124 = vpack.c.b16 %v123, %v122
    %v127 = vunpack.c.l.b16 %v61
    %v128 = vunpack.c.l.b16 %v62
    %v129 = vpack.c.b16 %v128, %v127
    %vm131 = vcmask 130048
    %v133 = vsel %vm131, %v124, 0
    %135 = vmatprep.subr.bf16.mxu0 0
    %136 = vmatpush1.bf16.msra.mxu0 %v129
    %137 = vmatprep.subr.bf16.mxu0 0
    %138 = vmatpush1.bf16.msra.mxu0 0
    %139 = vmatprep.subr.bf16.mxu0 0
    %140 = vmatpush1.bf16.msra.mxu0 0
    %141 = vmatprep.subr.bf16.mxu0 0
    %142 = vmatpush1.bf16.msra.mxu0 0
    %143 = vmatprep.subr.bf16.mxu0 0
    %144 = vmatpush1.bf16.msra.mxu0 0
    %145 = vmatprep.subr.bf16.mxu0 0
    %146 = vmatpush1.bf16.msra.mxu0 0
    %147 = vmatprep.subr.bf16.mxu0 0
    %148 = vmatpush1.bf16.msra.mxu0 0
    %149 = vmatprep.subr.bf16.mxu0 0
    %150 = vmatpush1.bf16.msra.mxu0 0
    %151 = vmatprep.subr.bf16.mxu0 0
    %152 = vmatpush1.bf16.msra.mxu0 0
    %153 = vmatprep.subr.bf16.mxu0 0
    %154 = vmatpush1.bf16.msra.mxu0 0
    %155 = vmatprep.subr.bf16.mxu0 0
    %156 = vmatpush1.bf16.msra.mxu0 0
    %157 = vmatprep.subr.bf16.mxu0 0
    %158 = vmatpush1.bf16.msra.mxu0 0
    %159 = vmatprep.subr.bf16.mxu0 0
    %160 = vmatpush1.bf16.msra.mxu0 0
    %161 = vmatprep.subr.bf16.mxu0 0
    %162 = vmatpush1.bf16.msra.mxu0 0
    %163 = vmatprep.subr.bf16.mxu0 0
    %164 = vmatpush1.bf16.msra.mxu0 0
    %165 = vmatprep.subr.bf16.mxu0 0
    %166 = vmatpush1.bf16.msra.mxu0 0
    %167 = vmatprep.mubr.bf16.mxu0 0
    %168 = vmatmul.mubr.bf16.gmra.mrb[0].mxu0 %v133
    %v169 = vpop.f32.mrb[0].mxu0
    %v170 = vadd.f32 %v114, %v169
    %v171 = vpop.f32.mrb[0].mxu0
    %v172 = vpop.f32.mrb[0].mxu0
    %v173 = vadd.f32 %v117, %v172
    %v174 = vpop.f32.mrb[0].mxu0
    %175 = vdwg.mxu0
    %v176 = vld [vmem:[%s2] sm:$0xf]
    %v177 = vld [vmem:[%s2 + $0x4] sm:$0xf]
    %v178 = vld [vmem:[%s5] sm:$0xf]
    %v181 = vunpack.c.l.b16 %v176
    %v182 = vunpack.c.l.b16 %v177
    %v183 = vpack.c.b16 %v182, %v181
    %vm184 = vcmask 64512
    %v186 = vsel %vm184, %v183, 0
    %vm188 = vcmask 1043456
    %v190 = vsel %vm188, %v178, 0
    %192 = vmatprep.subr.bf16.mxu0 0
    %193 = vmatpush1.bf16.msra.mxu0 %v190
    %194 = vmatprep.subr.bf16.mxu0 0
    %195 = vmatpush1.bf16.msra.mxu0 0
    %196 = vmatprep.subr.bf16.mxu0 0
    %197 = vmatpush1.bf16.msra.mxu0 0
    %198 = vmatprep.subr.bf16.mxu0 0
    %199 = vmatpush1.bf16.msra.mxu0 0
    %200 = vmatprep.subr.bf16.mxu0 0
    %201 = vmatpush1.bf16.msra.mxu0 0
    %202 = vmatprep.subr.bf16.mxu0 0
    %203 = vmatpush1.bf16.msra.mxu0 0
    %204 = vmatprep.subr.bf16.mxu0 0
    %205 = vmatpush1.bf16.msra.mxu0 0
    %206 = vmatprep.subr.bf16.mxu0 0
    %207 = vmatpush1.bf16.msra.mxu0 0
    %208 = vmatprep.subr.bf16.mxu0 0
    %209 = vmatpush1.bf16.msra.mxu0 0
    %210 = vmatprep.subr.bf16.mxu0 0
    %211 = vmatpush1.bf16.msra.mxu0 0
    %212 = vmatprep.subr.bf16.mxu0 0
    %213 = vmatpush1.bf16.msra.mxu0 0
    %214 = vmatprep.subr.bf16.mxu0 0
    %215 = vmatpush1.bf16.msra.mxu0 0
    %216 = vmatprep.subr.bf16.mxu0 0
    %217 = vmatpush1.bf16.msra.mxu0 0
    %218 = vmatprep.subr.bf16.mxu0 0
    %219 = vmatpush1.bf16.msra.mxu0 0
    %220 = vmatprep.subr.bf16.mxu0 0
    %221 = vmatpush1.bf16.msra.mxu0 0
    %222 = vmatprep.subr.bf16.mxu0 0
    %223 = vmatpush1.bf16.msra.mxu0 0
    %224 = vmatprep.mubr.bf16.mxu0 0
    %225 = vmatmul.mubr.bf16.gmra.mrb[0].mxu0 %v186
    %v226 = vpop.f32.mrb[0].mxu0
    %v227 = vadd.f32 0.0, %v226
    %v228 = vpop.f32.mrb[0].mxu0
    %v229 = vpop.f32.mrb[0].mxu0
    %v230 = vadd.f32 0.0, %v229
    %v231 = vpop.f32.mrb[0].mxu0
    %232 = vdwg.mxu0
    %v233 = vadd.f32 %v170, %v227
    %v234 = vadd.f32 %v173, %v230
    %v235 = vld [vmem:[%s6] sm:$0x1]
    %v237 = vlaneseq
    %v238 = vshrl.u32 %v237, 7
    %v239 = vsub.s32 0, %v238
    %v240 = vrot.slane %v235, %v239
    %v242 = vadd.f32 %v233, %v240
    %v243 = vadd.f32 %v234, %v240
    %v244 = vmax.f32 %v242, 0.0
    %v245 = vmax.f32 %v243, 0.0
    %v246 = vpack.c.bf16 %v245, %v244
    %v247 = vld [vmem:[%s7] sm:$0xf]
    %v248 = vld [vmem:[%s7 + $0x4] sm:$0xf]
    %v249 = vld [vmem:[%s7 + $0x8] sm:$0xf]
    %v250 = vld [vmem:[%s7 + $0xc] sm:$0xf]
    %v251 = vld [vmem:[%s7 + $0x10] sm:$0xf]
    %v252 = vld [vmem:[%s7 + $0x14] sm:$0xf]
    %v253 = vld [vmem:[%s7 + $0x18] sm:$0xf]
    %v254 = vld [vmem:[%s7 + $0x1c] sm:$0xf]
    %v255 = vld [vmem:[%s7 + $0x20] sm:$0xf]
    %v256 = vld [vmem:[%s7 + $0x24] sm:$0xf]
    %v257 = vld [vmem:[%s7 + $0x28] sm:$0xf]
    %v258 = vld [vmem:[%s7 + $0x2c] sm:$0xf]
    %v259 = vld [vmem:[%s7 + $0x30] sm:$0xf]
    %v260 = vld [vmem:[%s7 + $0x34] sm:$0xf]
    %v261 = vld [vmem:[%s7 + $0x38] sm:$0xf]
    %v262 = vld [vmem:[%s7 + $0x3c] sm:$0xf]
    %v263 = vld [vmem:[%s8] sm:$0x1]
    %v265 = vlaneseq
    %v266 = vshrl.u32 %v265, 7
    %v267 = vsub.s32 0, %v266
    %v268 = vrot.slane %v263, %v267
    %v286 = vunpack.c.l.b16 %v247
    %v287 = vunpack.c.l.b16 %v248
    %v288 = vunpack.c.l.b16 %v249
    %v289 = vunpack.c.l.b16 %v250
    %v290 = vunpack.c.l.b16 %v251
    %v291 = vunpack.c.l.b16 %v252
    %v292 = vunpack.c.l.b16 %v253
    %v293 = vunpack.c.l.b16 %v254
    %v294 = vunpack.c.l.b16 %v255
    %v295 = vunpack.c.l.b16 %v256
    %v296 = vunpack.c.l.b16 %v257
    %v297 = vunpack.c.l.b16 %v258
    %v298 = vunpack.c.l.b16 %v259
    %v299 = vunpack.c.l.b16 %v260
    %v300 = vunpack.c.l.b16 %v261
    %v301 = vunpack.c.l.b16 %v262
    %v302 = vpack.c.b16 %v287, %v286
    %v303 = vpack.c.b16 %v289, %v288
    %v304 = vpack.c.b16 %v291, %v290
    %v305 = vpack.c.b16 %v293, %v292
    %v306 = vpack.c.b16 %v295, %v294
    %v307 = vpack.c.b16 %v297, %v296
    %v308 = vpack.c.b16 %v299, %v298
    %v309 = vpack.c.b16 %v301, %v300
    %318 = vmatprep.subr.bf16.mxu0 0
    %319 = vmatpush1.bf16.msra.mxu0 %v302
    %320 = vmatprep.subr.bf16.mxu0 0
    %321 = vmatpush1.bf16.msra.mxu0 %v303
    %322 = vmatprep.subr.bf16.mxu0 0
    %323 = vmatpush1.bf16.msra.mxu0 %v304
    %324 = vmatprep.subr.bf16.mxu0 0
    %325 = vmatpush1.bf16.msra.mxu0 %v305
    %326 = vmatprep.subr.bf16.mxu0 0
    %327 = vmatpush1.bf16.msra.mxu0 %v306
    %328 = vmatprep.subr.bf16.mxu0 0
    %329 = vmatpush1.bf16.msra.mxu0 %v307
    %330 = vmatprep.subr.bf16.mxu0 0
    %331 = vmatpush1.bf16.msra.mxu0 %v308
    %332 = vmatprep.subr.bf16.mxu0 0
    %333 = vmatpush1.bf16.msra.mxu0 %v309
    %334 = vmatprep.subr.bf16.mxu0 0
    %335 = vmatpush1.bf16.msra.mxu0 0
    %336 = vmatprep.subr.bf16.mxu0 0
    %337 = vmatpush1.bf16.msra.mxu0 0
    %338 = vmatprep.subr.bf16.mxu0 0
    %339 = vmatpush1.bf16.msra.mxu0 0
    %340 = vmatprep.subr.bf16.mxu0 0
    %341 = vmatpush1.bf16.msra.mxu0 0
    %342 = vmatprep.subr.bf16.mxu0 0
    %343 = vmatpush1.bf16.msra.mxu0 0
    %344 = vmatprep.subr.bf16.mxu0 0
    %345 = vmatpush1.bf16.msra.mxu0 0
    %346 = vmatprep.subr.bf16.mxu0 0
    %347 = vmatpush1.bf16.msra.mxu0 0
    %348 = vmatprep.subr.bf16.mxu0 0
    %349 = vmatpush1.bf16.msra.mxu0 0
    %350 = vmatprep.mubr.bf16.mxu0 0
    %351 = vmatmul.mubr.bf16.gmra.mrb[0].mxu0 %v246
    %v352 = vpop.f32.mrb[0].mxu0
    %v353 = vadd.f32 %v268, %v352
    %v354 = vpop.f32.mrb[0].mxu0
    %v355 = vpop.f32.mrb[0].mxu0
    %v356 = vadd.f32 %v268, %v355
    %v357 = vpop.f32.mrb[0].mxu0
    %358 = vdwg.mxu0
    %v359 = vmax.f32 %v353, 0.0
    %v360 = vmax.f32 %v356, 0.0
    %v361 = vpack.c.bf16 %v360, %v359
    %v362 = vld [vmem:[#allocation2] sm:$0xf]
    %v363 = vld [vmem:[#allocation2 + $0x4] sm:$0xf]
    %v364 = vld [vmem:[#allocation2 + $0x8] sm:$0xf]
    %v365 = vld [vmem:[#allocation2 + $0xc] sm:$0xf]
    %v366 = vld [vmem:[#allocation2 + $0x10] sm:$0xf]
    %v367 = vld [vmem:[#allocation2 + $0x14] sm:$0xf]
    %v368 = vld [vmem:[#allocation2 + $0x18] sm:$0xf]
    %v369 = vld [vmem:[#allocation2 + $0x1c] sm:$0xf]
    %v370 = vld [vmem:[#allocation2 + $0x20] sm:$0xf]
    %v371 = vld [vmem:[#allocation2 + $0x24] sm:$0xf]
    %v372 = vld [vmem:[#allocation2 + $0x28] sm:$0xf]
    %v373 = vld [vmem:[#allocation2 + $0x2c] sm:$0xf]
    %v374 = vld [vmem:[#allocation2 + $0x30] sm:$0xf]
    %v375 = vld [vmem:[#allocation2 + $0x34] sm:$0xf]
    %v376 = vld [vmem:[#allocation2 + $0x38] sm:$0xf]
    %v377 = vld [vmem:[#allocation2 + $0x3c] sm:$0xf]
    %v378 = vld [vmem:[%s10] sm:$0x1]
    %v380 = vlaneseq
    %v381 = vshrl.u32 %v380, 7
    %v382 = vsub.s32 0, %v381
    %v383 = vrot.slane %v378, %v382
    %v401 = vunpack.c.l.b16 %v362
    %v402 = vunpack.c.l.b16 %v363
    %v403 = vunpack.c.l.b16 %v364
    %v404 = vunpack.c.l.b16 %v365
    %v405 = vunpack.c.l.b16 %v366
    %v406 = vunpack.c.l.b16 %v367
    %v407 = vunpack.c.l.b16 %v368
    %v408 = vunpack.c.l.b16 %v369
    %v409 = vunpack.c.l.b16 %v370
    %v410 = vunpack.c.l.b16 %v371
    %v411 = vunpack.c.l.b16 %v372
    %v412 = vunpack.c.l.b16 %v373
    %v413 = vunpack.c.l.b16 %v374
    %v414 = vunpack.c.l.b16 %v375
    %v415 = vunpack.c.l.b16 %v376
    %v416 = vunpack.c.l.b16 %v377
    %v417 = vpack.c.b16 %v402, %v401
    %v418 = vpack.c.b16 %v404, %v403
    %v419 = vpack.c.b16 %v406, %v405
    %v420 = vpack.c.b16 %v408, %v407
    %v421 = vpack.c.b16 %v410, %v409
    %v422 = vpack.c.b16 %v412, %v411
    %v423 = vpack.c.b16 %v414, %v413
    %v424 = vpack.c.b16 %v416, %v415
    %433 = vmatprep.subr.bf16.mxu0 0
    %434 = vmatpush1.bf16.msra.mxu0 %v417
    %435 = vmatprep.subr.bf16.mxu0 0
    %436 = vmatpush1.bf16.msra.mxu0 %v418
    %437 = vmatprep.subr.bf16.mxu0 0
    %438 = vmatpush1.bf16.msra.mxu0 %v419
    %439 = vmatprep.subr.bf16.mxu0 0
    %440 = vmatpush1.bf16.msra.mxu0 %v420
    %441 = vmatprep.subr.bf16.mxu0 0
    %442 = vmatpush1.bf16.msra.mxu0 %v421
    %443 = vmatprep.subr.bf16.mxu0 0
    %444 = vmatpush1.bf16.msra.mxu0 %v422
    %445 = vmatprep.subr.bf16.mxu0 0
    %446 = vmatpush1.bf16.msra.mxu0 %v423
    %447 = vmatprep.subr.bf16.mxu0 0
    %448 = vmatpush1.bf16.msra.mxu0 %v424
    %449 = vmatprep.subr.bf16.mxu0 0
    %450 = vmatpush1.bf16.msra.mxu0 0
    %451 = vmatprep.subr.bf16.mxu0 0
    %452 = vmatpush1.bf16.msra.mxu0 0
    %453 = vmatprep.subr.bf16.mxu0 0
    %454 = vmatpush1.bf16.msra.mxu0 0
    %455 = vmatprep.subr.bf16.mxu0 0
    %456 = vmatpush1.bf16.msra.mxu0 0
    %457 = vmatprep.subr.bf16.mxu0 0
    %458 = vmatpush1.bf16.msra.mxu0 0
    %459 = vmatprep.subr.bf16.mxu0 0
    %460 = vmatpush1.bf16.msra.mxu0 0
    %461 = vmatprep.subr.bf16.mxu0 0
    %462 = vmatpush1.bf16.msra.mxu0 0
    %463 = vmatprep.subr.bf16.mxu0 0
    %464 = vmatpush1.bf16.msra.mxu0 0
    %465 = vmatprep.mubr.bf16.mxu0 0
    %466 = vmatmul.mubr.bf16.gmra.mrb[0].mxu0 %v361
    %v467 = vpop.f32.mrb[0].mxu0
    %v468 = vadd.f32 %v383, %v467
    %v469 = vpop.f32.mrb[0].mxu0
    %v470 = vpop.f32.mrb[0].mxu0
    %v471 = vadd.f32 %v383, %v470
    %v472 = vpop.f32.mrb[0].mxu0
    %473 = vdwg.mxu0
    %v474 = vmax.f32 %v468, 0.0
    %v475 = vmax.f32 %v471, 0.0
    %v476 = vld [vmem:[%s11] sm:$0x1]
    %v478 = vlaneseq
    %v479 = vshrl.u32 %v478, 7
    %v480 = vsub.s32 0, %v479
    %v481 = vrot.slane %v476, %v480
    %v483 = vmul.f32 %v474, %v481
    %v484 = vmul.f32 %v475, %v481
    %485 = vadd.xlane.f32.xlu0 %v483
    %v486 = vpop.xlane.xlu0 %485
    %487 = vadd.xlane.f32.xlu0 %v484
    %v488 = vpop.xlane.xlu0 %487
    %v489 = vld [vmem:[%s12] sm:$0x1]
    %v491 = vlaneseq
    %v492 = vshrl.u32 %v491, 7
    %v493 = vsub.s32 0, %v492
    %v494 = vrot.slane %v489, %v493
    %v496 = vadd.f32 %v486, %v494
    %v497 = vadd.f32 %v488, %v494
    %498 = vst [vmem:[%s13] sm:$0xff] %v496
    %499 = vst [vmem:[%s13 + $0x8] sm:$0xff] %v497
    // Predicated region
    $region58: #{critic_forward.1} parent=1 // pred_check
      _
    $region59: #{critic_forward.1} parent=1 // pred_check_branch
      %501 = sbr.rel (0) target = $region61
    $region60: #{critic_forward.1} parent=1 // pred_region
      _
    $region61: #{critic_forward.1} parent=1 // pred_fallthru
      _
    // Predicated region
    $region62: #{critic_forward.1} parent=1 // pred_check
      _
    $region63: #{critic_forward.1} parent=1 // pred_check_branch
      %503 = sbr.rel (0) target = $region65
    $region64: #{critic_forward.1} parent=1 // pred_region
      _
    $region65: #{critic_forward.1} parent=1 // pred_fallthru
      _
    %504 = vsyncpa [#allocation3], 1

</llo_original>
